<compile_context>
chip_gen: v5e
topology: v5e:2x2
jax: 0.10.0
libtpu: 0.0.40
codegen_flags: <defaults>
</compile_context>

<pallas_src>
import numpy as np
import jax
import jax.numpy as jnp
from jax.experimental import pallas as pl
from jax.experimental.pallas import tpu as pltpu


def qnet_kernel(x_ref, w1_ref, b1_ref, w2_ref, b2_ref, o_ref, x8_ref):
    # x_ref : (TB, 4)    batch-major observation tile (pipelined)
    # w1_ref: (8, 256)   layer-1 weight, transposed + zero-padded K 4 -> 8
    # b1_ref: (1, 256)
    # w2_ref: (256, 2)   layer-2 weight, transposed to (in, out)
    # b2_ref: (1, 2)
    # o_ref : (TB, 2)
    # x8_ref: (TB, 8)    VMEM scratch holding the K-padded x tile
    n_in = x_ref.shape[1]

    # Zero-pad the contraction dim (4 -> 8) into VMEM scratch so layer 1 runs on
    # the MXU with a full-sublane-tile K.  Re-zeroed every step: the batch axis
    # is "parallel" (v7x may split it across TensorCores), so a program_id()==0
    # init guard would be unsafe; the extra (TB, 8) store pass is negligible.
    x8_ref[...] = jnp.zeros(x8_ref.shape, x8_ref.dtype)
    x8_ref[:, 0:n_in] = x_ref[...]

    # ---- Layer 1 on the MXU: (TB, 8) @ (8, 256) -> (TB, 256) ----------------
    # Bias + ReLU on the VPU over a lane-dense (TB, 256) slab (no masked ops).
    h = jnp.dot(x8_ref[...], w1_ref[...], preferred_element_type=jnp.float32)
    h = jnp.maximum(h + b1_ref[...], 0.0)

    # ---- Layer 2 on the MXU: full K=256 contraction, (TB, 256) @ (256, 2) ---
    # Output stays in the caller's (B, 2) layout so no wrapper transpose/slice.
    out = jnp.dot(h, w2_ref[...], preferred_element_type=jnp.float32) + b2_ref[...]
    o_ref[...] = out.astype(o_ref.dtype)


def _pick_batch_tile(batch, tb_max):
    """Batch tile: multiple of 8, <= tb_max, >= 2 evenly sized grid steps when the
    batch allows (v7x megacore), and < 8 rows of padding waste (no rounding of the
    whole batch up to a tile multiple)."""
    b8 = 8 * pl.cdiv(batch, 8)
    if b8 <= 8:
        return 8
    n_steps = max(2, pl.cdiv(b8, tb_max))
    n_steps += n_steps % 2                       # even split across 2 TensorCores
    tile = 8 * pl.cdiv(pl.cdiv(batch, n_steps), 8)
    return min(tile, tb_max)


def prepare_params(w1, b1, w2, b2):
    """One-time transform of PyTorch-layout params ((out, in) weights) into the
    kernel layout.  Tiny tensors; do this once, outside the per-step path."""
    n_hidden, n_in = w1.shape
    k_pad = 8 * pl.cdiv(n_in, 8)
    w1p = jnp.pad(w1.T.astype(jnp.float32), ((0, k_pad - n_in), (0, 0)))  # (8, 256)
    w2t = w2.T.astype(jnp.float32)                                        # (256, 2)
    b1r = b1.reshape(1, n_hidden).astype(jnp.float32)                     # (1, 256)
    b2r = b2.reshape(1, -1).astype(jnp.float32)                           # (1, 2)
    return w1p, b1r, w2t, b2r


def qnet_forward(x, params, *, tb=2048):
    """Forward pass: x (B, 4) -> (B, 2), single pallas_call, no wrapper layout ops.

    tb: max batch tile.  Sweep {1024, 2048, 4096} for large B; >~8192 needs
    vmem_limit_bytes on v5e (16 MiB scoped default)."""
    w1p, b1r, w2t, b2r = params
    batch, n_in = x.shape
    k_pad, n_hidden = w1p.shape
    n_out = w2t.shape[1]

    tile = _pick_batch_tile(batch, tb)
    grid = (pl.cdiv(batch, tile),)

    return pl.pallas_call(
        qnet_kernel,
        out_shape=jax.ShapeDtypeStruct((batch, n_out), jnp.float32),
        grid_spec=pltpu.PrefetchScalarGridSpec(
            num_scalar_prefetch=0,
            grid=grid,
            in_specs=[
                pl.BlockSpec((tile, n_in), lambda i: (i, 0)),       # x tile (pipelined)
                pl.BlockSpec((k_pad, n_hidden), lambda i: (0, 0)),  # w1: VMEM-resident
                pl.BlockSpec((1, n_hidden), lambda i: (0, 0)),      # b1: VMEM-resident
                pl.BlockSpec((n_hidden, n_out), lambda i: (0, 0)),  # w2: VMEM-resident
                pl.BlockSpec((1, n_out), lambda i: (0, 0)),         # b2: VMEM-resident
            ],
            out_specs=pl.BlockSpec((tile, n_out), lambda i: (i, 0)),
            scratch_shapes=[pltpu.VMEM((tile, k_pad), jnp.float32)],
        ),
        compiler_params=pltpu.CompilerParams(
            dimension_semantics=("parallel",),   # batch axis: shard across TCs on v7x
        ),
    )(x, w1p, b1r, w2t, b2r)


@jax.jit
def qnet_apply(x, w1, b1, w2, b2):
    """PyTorch-equivalent forward: relu(x @ w1.T + b1) @ w2.T + b2."""
    return qnet_forward(x, prepare_params(w1, b1, w2, b2))


def init_params(key):
    # Mirrors PyTorch Linear init: uniform(-1/sqrt(fan_in), 1/sqrt(fan_in)),
    # weights in PyTorch's native (out_features, in_features) layout.
    k1, k2, k3, k4 = jax.random.split(key, 4)
    lim1 = 1.0 / jnp.sqrt(4.0)
    lim2 = 1.0 / jnp.sqrt(256.0)
    w1 = jax.random.uniform(k1, (256, 4), jnp.float32, -lim1, lim1)
    b1 = jax.random.uniform(k2, (256,), jnp.float32, -lim1, lim1)
    w2 = jax.random.uniform(k3, (2, 256), jnp.float32, -lim2, lim2)
    b2 = jax.random.uniform(k4, (2,), jnp.float32, -lim2, lim2)
    return w1, b1, w2, b2


# TODO(synk): sample_action's epsilon-greedy branch (random.random / argmax().item())
# is host-side Python control flow, not a tensor op, so it is not kernelized.

if __name__ == "__main__":
    key = jax.random.PRNGKey(0)
    k_params, k_x1, k_x2 = jax.random.split(key, 3)
    w1, b1, w2, b2 = init_params(k_params)

    w1n = np.asarray(w1, np.float64)
    b1n = np.asarray(b1, np.float64)
    w2n = np.asarray(w2, np.float64)
    b2n = np.asarray(b2, np.float64)

    def ref_np(xv):
        xn = np.asarray(xv, np.float64)
        return np.maximum(xn @ w1n.T + b1n, 0.0) @ w2n.T + b2n

    # Small CartPole-like batches of (B, 4) observations; the second size
    # exercises the multi-step grid and a partial last batch tile.
    for k_x, bsz in ((k_x1, 8), (k_x2, 52)):
        x = jax.random.normal(k_x, (bsz, 4), jnp.float32)
        out = jax.block_until_ready(qnet_apply(x, w1, b1, w2, b2))
        assert out.shape == (bsz, 2)
        np.testing.assert_allclose(np.asarray(out), ref_np(x), rtol=1e-4, atol=1e-4)

    print("KERNEL_OK")
</pallas_src>

<mosaic_0001>
module attributes {stable_mosaic.version = 11 : i64} {
  func.func @qnet_kernel(%arg0: i32, %arg1: memref<8x4xf32, #tpu.memory_space<vmem>>, %arg2: memref<8x256xf32, #tpu.memory_space<vmem>>, %arg3: memref<1x256xf32, #tpu.memory_space<vmem>>, %arg4: memref<256x2xf32, #tpu.memory_space<vmem>>, %arg5: memref<1x2xf32, #tpu.memory_space<vmem>>, %arg6: memref<8x2xf32, #tpu.memory_space<vmem>>, %arg7: memref<8x8xf32, #tpu.memory_space<vmem>>) attributes {dimension_semantics = [#tpu.dimension_semantics<parallel>], iteration_bounds = array<i64: 1>, scalar_prefetch = 0 : i64, scratch_operands = 1 : i64, tpu.core_type = #tpu.core_type<tc>, window_params = [{transform_indices = @transform_0, window_bounds = array<i64: 8, 4>}, {pipeline_mode = #tpu.pipeline_mode<synchronous>, transform_indices = @transform_1, window_bounds = array<i64: 8, 256>}, {pipeline_mode = #tpu.pipeline_mode<synchronous>, transform_indices = @transform_2, window_bounds = array<i64: 1, 256>}, {pipeline_mode = #tpu.pipeline_mode<synchronous>, transform_indices = @transform_3, window_bounds = array<i64: 256, 2>}, {pipeline_mode = #tpu.pipeline_mode<synchronous>, transform_indices = @transform_4, window_bounds = array<i64: 1, 2>}, {transform_indices = @transform_5, window_bounds = array<i64: 8, 2>}]} {
    %cst = arith.constant 0.000000e+00 : f32
    %0 = vector.broadcast %cst : f32 to vector<8x8xf32>
    %c0 = arith.constant 0 : index
    %c0_0 = arith.constant 0 : index
    %1 = vector.load %arg7[%c0, %c0_0] : memref<8x8xf32, #tpu.memory_space<vmem>>, vector<8x8xf32>
    tpu.vector_store %arg7[%c0, %c0_0], %0 {strides = array<i32>} : memref<8x8xf32, #tpu.memory_space<vmem>>, vector<8x8xf32>,
    %c0_1 = arith.constant 0 : index
    %c0_2 = arith.constant 0 : index
    %2 = vector.load %arg1[%c0_1, %c0_2] : memref<8x4xf32, #tpu.memory_space<vmem>>, vector<8x4xf32>
    %c0_3 = arith.constant 0 : index
    %c0_4 = arith.constant 0 : index
    %3 = vector.load %arg7[%c0_3, %c0_4] : memref<8x8xf32, #tpu.memory_space<vmem>>, vector<8x4xf32>
    tpu.vector_store %arg7[%c0_3, %c0_4], %2 {strides = array<i32>} : memref<8x8xf32, #tpu.memory_space<vmem>>, vector<8x4xf32>,
    %c0_5 = arith.constant 0 : index
    %c0_6 = arith.constant 0 : index
    %4 = vector.load %arg7[%c0_5, %c0_6] : memref<8x8xf32, #tpu.memory_space<vmem>>, vector<8x8xf32>
    %c0_7 = arith.constant 0 : index
    %c0_8 = arith.constant 0 : index
    %5 = vector.load %arg2[%c0_7, %c0_8] : memref<8x256xf32, #tpu.memory_space<vmem>>, vector<8x256xf32>
    %cst_9 = arith.constant dense<0.000000e+00> : vector<8x256xf32>
    %6 = tpu.matmul %4, %5, %cst_9 {dimension_numbers = #tpu.dot_dimension_numbers<[1], [0], [0], [1], [0, 0, 1, 1], [], []>} : vector<8x8xf32>, vector<8x256xf32>, vector<8x256xf32> -> vector<8x256xf32>
    %c0_10 = arith.constant 0 : index
    %c0_11 = arith.constant 0 : index
    %7 = vector.load %arg3[%c0_10, %c0_11] : memref<1x256xf32, #tpu.memory_space<vmem>>, vector<1x256xf32>
    %8 = vector.broadcast %7 : vector<1x256xf32> to vector<8x256xf32>
    %9 = arith.addf %6, %8 : vector<8x256xf32>
    %cst_12 = arith.constant 0.000000e+00 : f32
    %10 = vector.broadcast %cst_12 : f32 to vector<8x256xf32>
    %11 = arith.maximumf %9, %10 : vector<8x256xf32>
    %c0_13 = arith.constant 0 : index
    %c0_14 = arith.constant 0 : index
    %12 = vector.load %arg4[%c0_13, %c0_14] : memref<256x2xf32, #tpu.memory_space<vmem>>, vector<256x2xf32>
    %cst_15 = arith.constant dense<0.000000e+00> : vector<8x2xf32>
    %13 = tpu.matmul %11, %12, %cst_15 {dimension_numbers = #tpu.dot_dimension_numbers<[1], [0], [0], [1], [0, 0, 1, 1], [], []>} : vector<8x256xf32>, vector<256x2xf32>, vector<8x2xf32> -> vector<8x2xf32>
    %c0_16 = arith.constant 0 : index
    %c0_17 = arith.constant 0 : index
    %14 = vector.load %arg5[%c0_16, %c0_17] : memref<1x2xf32, #tpu.memory_space<vmem>>, vector<1x2xf32>
    %15 = vector.broadcast %14 : vector<1x2xf32> to vector<8x2xf32>
    %16 = arith.addf %13, %15 : vector<8x2xf32>
    %c0_18 = arith.constant 0 : index
    %c0_19 = arith.constant 0 : index
    %17 = vector.load %arg6[%c0_18, %c0_19] : memref<8x2xf32, #tpu.memory_space<vmem>>, vector<8x2xf32>
    tpu.vector_store %arg6[%c0_18, %c0_19], %16 {strides = array<i32>} : memref<8x2xf32, #tpu.memory_space<vmem>>, vector<8x2xf32>,
    return
  }
  func.func @transform_0(%arg0: i32) -> (i32, i32) {
    %c0_i32 = arith.constant 0 : i32
    %c0_i32_0 = arith.constant 0 : i32
    return %arg0, %c0_i32 : i32, i32
  }
  func.func @transform_1(%arg0: i32) -> (i32, i32) {
    %c0_i32 = arith.constant 0 : i32
    %c0_i32_0 = arith.constant 0 : i32
    %c0_i32_1 = arith.constant 0 : i32
    return %c0_i32, %c0_i32_0 : i32, i32
  }
  func.func @transform_2(%arg0: i32) -> (i32, i32) {
    %c0_i32 = arith.constant 0 : i32
    %c0_i32_0 = arith.constant 0 : i32
    %c0_i32_1 = arith.constant 0 : i32
    return %c0_i32, %c0_i32_0 : i32, i32
  }
  func.func @transform_3(%arg0: i32) -> (i32, i32) {
    %c0_i32 = arith.constant 0 : i32
    %c0_i32_0 = arith.constant 0 : i32
    %c0_i32_1 = arith.constant 0 : i32
    return %c0_i32, %c0_i32_0 : i32, i32
  }
  func.func @transform_4(%arg0: i32) -> (i32, i32) {
    %c0_i32 = arith.constant 0 : i32
    %c0_i32_0 = arith.constant 0 : i32
    %c0_i32_1 = arith.constant 0 : i32
    return %c0_i32, %c0_i32_0 : i32, i32
  }
  func.func @transform_5(%arg0: i32) -> (i32, i32) {
    %c0_i32 = arith.constant 0 : i32
    %c0_i32_0 = arith.constant 0 : i32
    return %arg0, %c0_i32 : i32, i32
  }
}

</mosaic_0001>

<llo_original>
// kernel: qnet_apply.1
$region0: #{qnet_apply.1}
  #allocation0 [shape = 'u32[]', space=smem, size = 0x4, offset = 0x4, fixed_abs, tag = 'smem constant byte address 0x4 - core index']
  #allocation1 [shape = 'u32[72,128]{1,0:T(1,128)}', space=vmem, size = 0x9000, scoped, tag = 'internal scratch']
  #allocation2 [shape = 'f32[8,8]{1,0:T(8,128)}', space=vmem, size = 0x1000, scoped, tag = 'scratch operand']
  %s0 = inlined_call_operand.vmem [shape: f32[8,4], index: 0, kind: input, shape index: {}]
  %s1 = inlined_call_operand.vmem [shape: f32[8,256], index: 1, kind: input, shape index: {}]
  %s2 = inlined_call_operand.vmem [shape: f32[1,256], index: 2, kind: input, shape index: {}]
  %s3 = inlined_call_operand.vmem [shape: f32[256,2], index: 3, kind: input, shape index: {}]
  %s4 = inlined_call_operand.vmem [shape: f32[1,2], index: 4, kind: input, shape index: {}]
  %s5 = inlined_call_operand.vmem [shape: f32[8,2], index: 5, kind: output, shape index: {}]
  %s6 = sld [smem:[#allocation0]]
  $region30: #{qnet_apply.1} parent=0
    _
  %s8 = ssub.s32 1, %s6
  %s9 = scalar_select 0, %s8, %s6
  // Predicated region
  $region2: #{qnet_apply.1} parent=0 // pred_check
    _
  $region3: #{qnet_apply.1} parent=0 // pred_check_branch
    %11 = sbr.rel (0) target = $region5
  $region4: #{qnet_apply.1} parent=0 // pred_region
    _
  $region5: #{qnet_apply.1} parent=0 // pred_fallthru
    _
  // Predicated region
  $region6: #{qnet_apply.1} parent=0 // pred_check
    _
  $region7: #{qnet_apply.1} parent=0 // pred_check_branch
    %13 = sbr.rel (0) target = $region9
  $region8: #{qnet_apply.1} parent=0 // pred_region
    _
  $region9: #{qnet_apply.1} parent=0 // pred_fallthru
    _
  // Predicated region
  $region10: #{qnet_apply.1} parent=0 // pred_check
    _
  $region11: #{qnet_apply.1} parent=0 // pred_check_branch
    %15 = sbr.rel (0) target = $region13
  $region12: #{qnet_apply.1} parent=0 // pred_region
    _
  $region13: #{qnet_apply.1} parent=0 // pred_fallthru
    _
  // Predicated region
  $region14: #{qnet_apply.1} parent=0 // pred_check
    _
  $region15: #{qnet_apply.1} parent=0 // pred_check_branch
    %17 = sbr.rel (0) target = $region17
  $region16: #{qnet_apply.1} parent=0 // pred_region
    _
  $region17: #{qnet_apply.1} parent=0 // pred_fallthru
    _
  // Predicated region
  $region18: #{qnet_apply.1} parent=0 // pred_check
    _
  $region19: #{qnet_apply.1} parent=0 // pred_check_branch
    %19 = sbr.rel (0) target = $region21
  $region20: #{qnet_apply.1} parent=0 // pred_region
    _
  $region21: #{qnet_apply.1} parent=0 // pred_fallthru
    _
  %vm20 = vcmask 64512
  %21 = vst.msk [vmem:[#allocation2] sm:$0xff] %vm20, 0.0
  %v22 = vld [vmem:[%s0] sm:$0xff]
  %vm23 = vcmask 31744
  %24 = vst.msk [vmem:[#allocation2] sm:$0xff] %vm23, %v22
  %v25 = vld [vmem:[#allocation2] sm:$0xff]
  %v26 = vld [vmem:[%s1] sm:$0xff]
  %v27 = vld [vmem:[%s1 + $0x8] sm:$0xff]
  %v28 = vld [vmem:[%s2] sm:$0x3]
  %v30 = vperm.slane %v28, 0
  %v31 = vperm.slane %v28, 1
  %v35 = vsel %vm20, %v25, 0
  %37 = vmatpush.msra.mxu0 0.0
  %38 = vmatpush.msra.mxu0 0.0
  %39 = vmatpush.msra.mxu0 0.0
  %40 = vmatpush.msra.mxu0 0.0
  %41 = vmatpush.msra.mxu0 0.0
  %42 = vmatpush.msra.mxu0 0.0
  %43 = vmatpush.msra.mxu0 0.0
  %44 = vmatpush.msra.mxu0 0.0
  %45 = vmatpush.msra.mxu0 0.0
  %46 = vmatpush.msra.mxu0 0.0
  %47 = vmatpush.msra.mxu0 0.0
  %48 = vmatpush.msra.mxu0 0.0
  %49 = vmatpush.msra.mxu0 0.0
  %50 = vmatpush.msra.mxu0 0.0
  %51 = vmatpush.msra.mxu0 0.0
  %52 = vmatpush.msra.mxu0 %v26
  %53 = vmatmul.f32.gmra.mxu0 %v35
  %v54 = vpop.f32.mrf.mxu0
  %v55 = vadd.f32 %v30, %v54
  %56 = vdwg.mxu0
  %57 = vmatpush.msra.mxu0 0.0
  %58 = vmatpush.msra.mxu0 0.0
  %59 = vmatpush.msra.mxu0 0.0
  %60 = vmatpush.msra.mxu0 0.0
  %61 = vmatpush.msra.mxu0 0.0
  %62 = vmatpush.msra.mxu0 0.0
  %63 = vmatpush.msra.mxu0 0.0
  %64 = vmatpush.msra.mxu0 0.0
  %65 = vmatpush.msra.mxu0 0.0
  %66 = vmatpush.msra.mxu0 0.0
  %67 = vmatpush.msra.mxu0 0.0
  %68 = vmatpush.msra.mxu0 0.0
  %69 = vmatpush.msra.mxu0 0.0
  %70 = vmatpush.msra.mxu0 0.0
  %71 = vmatpush.msra.mxu0 0.0
  %72 = vmatpush.msra.mxu0 %v27
  %73 = vmatmul.f32.gmra.mxu0 %v35
  %v74 = vpop.f32.mrf.mxu0
  %v75 = vadd.f32 %v31, %v74
  %76 = vdwg.mxu0
  %v77 = vmax.f32 %v55, 0.0
  %v78 = vmax.f32 %v75, 0.0
  %v79 = vld [vmem:[%s3] sm:$0xff]
  %v80 = vld [vmem:[%s3 + $0x8] sm:$0xff]
  %v81 = vld [vmem:[%s3 + $0x10] sm:$0xff]
  %v82 = vld [vmem:[%s3 + $0x18] sm:$0xff]
  %v83 = vld [vmem:[%s3 + $0x20] sm:$0xff]
  %v84 = vld [vmem:[%s3 + $0x28] sm:$0xff]
  %v85 = vld [vmem:[%s3 + $0x30] sm:$0xff]
  %v86 = vld [vmem:[%s3 + $0x38] sm:$0xff]
  %v87 = vld [vmem:[%s3 + $0x40] sm:$0xff]
  %v88 = vld [vmem:[%s3 + $0x48] sm:$0xff]
  %v89 = vld [vmem:[%s3 + $0x50] sm:$0xff]
  %v90 = vld [vmem:[%s3 + $0x58] sm:$0xff]
  %v91 = vld [vmem:[%s3 + $0x60] sm:$0xff]
  %v92 = vld [vmem:[%s3 + $0x68] sm:$0xff]
  %v93 = vld [vmem:[%s3 + $0x70] sm:$0xff]
  %v94 = vld [vmem:[%s3 + $0x78] sm:$0xff]
  %v95 = vld [vmem:[%s3 + $0x80] sm:$0xff]
  %v96 = vld [vmem:[%s3 + $0x88] sm:$0xff]
  %v97 = vld [vmem:[%s3 + $0x90] sm:$0xff]
  %v98 = vld [vmem:[%s3 + $0x98] sm:$0xff]
  %v99 = vld [vmem:[%s3 + $0xa0] sm:$0xff]
  %v100 = vld [vmem:[%s3 + $0xa8] sm:$0xff]
  %v101 = vld [vmem:[%s3 + $0xb0] sm:$0xff]
  %v102 = vld [vmem:[%s3 + $0xb8] sm:$0xff]
  %v103 = vld [vmem:[%s3 + $0xc0] sm:$0xff]
  %v104 = vld [vmem:[%s3 + $0xc8] sm:$0xff]
  %v105 = vld [vmem:[%s3 + $0xd0] sm:$0xff]
  %v106 = vld [vmem:[%s3 + $0xd8] sm:$0xff]
  %v107 = vld [vmem:[%s3 + $0xe0] sm:$0xff]
  %v108 = vld [vmem:[%s3 + $0xe8] sm:$0xff]
  %v109 = vld [vmem:[%s3 + $0xf0] sm:$0xff]
  %v110 = vld [vmem:[%s3 + $0xf8] sm:$0xff]
  %v111 = vld [vmem:[%s4] sm:$0x1]
  %v113 = vperm.slane %v111, 0
  %115 = vmatpush.msra.mxu0 %v94
  %116 = vmatpush.msra.mxu0 %v93
  %117 = vmatpush.msra.mxu0 %v92
  %118 = vmatpush.msra.mxu0 %v91
  %119 = vmatpush.msra.mxu0 %v90
  %120 = vmatpush.msra.mxu0 %v89
  %121 = vmatpush.msra.mxu0 %v88
  %122 = vmatpush.msra.mxu0 %v87
  %123 = vmatpush.msra.mxu0 %v86
  %124 = vmatpush.msra.mxu0 %v85
  %125 = vmatpush.msra.mxu0 %v84
  %126 = vmatpush.msra.mxu0 %v83
  %127 = vmatpush.msra.mxu0 %v82
  %128 = vmatpush.msra.mxu0 %v81
  %129 = vmatpush.msra.mxu0 %v80
  %130 = vmatpush.msra.mxu0 %v79
  %131 = vmatmul.f32.gmra.mxu0 %v77
  %v132 = vpop.f32.mrf.mxu0
  %v133 = vadd.f32 %v113, %v132
  %134 = vdwg.mxu0
  %135 = vmatpush.msra.mxu0 %v110
  %136 = vmatpush.msra.mxu0 %v109
  %137 = vmatpush.msra.mxu0 %v108
  %138 = vmatpush.msra.mxu0 %v107
  %139 = vmatpush.msra.mxu0 %v106
  %140 = vmatpush.msra.mxu0 %v105
  %141 = vmatpush.msra.mxu0 %v104
  %142 = vmatpush.msra.mxu0 %v103
  %143 = vmatpush.msra.mxu0 %v102
  %144 = vmatpush.msra.mxu0 %v101
  %145 = vmatpush.msra.mxu0 %v100
  %146 = vmatpush.msra.mxu0 %v99
  %147 = vmatpush.msra.mxu0 %v98
  %148 = vmatpush.msra.mxu0 %v97
  %149 = vmatpush.msra.mxu0 %v96
  %150 = vmatpush.msra.mxu0 %v95
  %151 = vmatmul.f32.gmra.mxu0 %v78
  %v152 = vpop.f32.mrf.mxu0
  %v153 = vadd.f32 %v133, %v152
  %154 = vdwg.mxu0
  %vm155 = vcmask 15360
  %156 = vst.msk [vmem:[%s5] sm:$0xff] %vm155, %v153
  // Predicated region
  $region22: #{qnet_apply.1} parent=0 // pred_check
    _
  $region23: #{qnet_apply.1} parent=0 // pred_check_branch
    %158 = sbr.rel (0) target = $region25
  $region24: #{qnet_apply.1} parent=0 // pred_region
    _
  $region25: #{qnet_apply.1} parent=0 // pred_fallthru
    _
  // Predicated region
  $region26: #{qnet_apply.1} parent=0 // pred_check
    _
  $region27: #{qnet_apply.1} parent=0 // pred_check_branch
    %160 = sbr.rel (0) target = $region29
  $region28: #{qnet_apply.1} parent=0 // pred_region
    _
  $region29: #{qnet_apply.1} parent=0 // pred_fallthru
    _

</llo_original>
